<compile_context>
chip_gen: v7x
topology: tpu7x:2x2x1
jax: 0.10.0
libtpu: 0.0.40
codegen_flags: <defaults>
</compile_context>

<pallas_src>
import functools

import jax
import jax.numpy as jnp
from jax import lax
from jax.experimental import pallas as pl
from jax.experimental.pallas import tpu as pltpu

EPS = 1e-5
C = 3  # BatchNorm1d(3) channel count


def _batchnorm_rows(h, gamma, beta, ind, indT, n_per_ch):
    """Training-mode BatchNorm1d(C) on channel-contiguous rows.

    h:     (R, F) f32; rows [c*n, (c+1)*n) belong to channel c, rows >= C*n are zero-pad rows.
    gamma: (C, 1) f32, beta: (C, 1) f32.
    ind:   (C, R) f32 channel indicator (0 on pad rows); indT: (R, C) f32.

    Per-channel mean/var over the n_per_ch * F elements of that channel (biased variance),
    matching PyTorch BatchNorm1d training-mode forward on (N, C, L) input.
    """
    feat = h.shape[1]
    inv_cnt = 1.0 / float(n_per_ch * feat)

    # Shared lane reduces: one row-sum and one row-sum-of-squares for all channels.
    row_s = jnp.sum(h, axis=1, keepdims=True)        # (R, 1)
    row_s2 = jnp.sum(h * h, axis=1, keepdims=True)   # (R, 1)

    # Per-channel aggregation on the MXU; stats stay vector-resident (no scalar round trips,
    # pad rows contribute 0 because ind is 0 there).
    s = jnp.dot(ind, row_s, preferred_element_type=jnp.float32)     # (C, 1)
    s2 = jnp.dot(ind, row_s2, preferred_element_type=jnp.float32)   # (C, 1)
    mean = s * inv_cnt
    var = jnp.maximum(s2 * inv_cnt - mean * mean, 0.0)  # clamp one-pass variance (f32 cancellation)
    scale_c = gamma * lax.rsqrt(var + EPS)               # (C, 1)
    shift_c = beta - mean * scale_c                      # (C, 1)

    # Expand per-channel scale/shift back to per-row columns on the MXU (pad rows -> 0).
    scale_rows = jnp.dot(indT, scale_c, preferred_element_type=jnp.float32)   # (R, 1)
    shift_rows = jnp.dot(indT, shift_c, preferred_element_type=jnp.float32)   # (R, 1)
    return h * scale_rows + shift_rows


def arc_nn_kernel(n, matmul_dtype,
                  x_ref,                # (R, F_in)       matmul_dtype
                  ind_ref, indT_ref,    # (C, R), (R, C)  f32
                  w1_ref, b1_ref,       # (F_in, 2H) matmul_dtype, (1, 2H) f32
                  g1_ref, be1_ref,      # (C, 1), (C, 1)  f32
                  w2_ref, b2_ref,       # (2H, H) matmul_dtype, (1, H) f32
                  g2_ref, be2_ref,      # (C, 1), (C, 1)  f32
                  w3_ref, b3_ref,       # (H, P) matmul_dtype, (1, P) f32  (P = OUT padded to 128)
                  o_ref):               # (N, C*P) f32 -- channels along lanes
    ind = ind_ref[...]
    indT = indT_ref[...]

    # ---- Linear(in, hidden*2) + ReLU + BatchNorm1d(3): one fused matmul for all 3 channels ----
    h = jnp.dot(x_ref[...], w1_ref[...], preferred_element_type=jnp.float32) + b1_ref[...]
    h = jnp.maximum(h, 0.0)
    h = _batchnorm_rows(h, g1_ref[...], be1_ref[...], ind, indT, n)

    # ---- Linear(hidden*2, hidden) + ReLU + BatchNorm1d(3) ----
    h = jnp.dot(h.astype(matmul_dtype), w2_ref[...],
                preferred_element_type=jnp.float32) + b2_ref[...]
    h = jnp.maximum(h, 0.0)
    h = _batchnorm_rows(h, g2_ref[...], be2_ref[...], ind, indT, n)

    # ---- Linear(hidden, out_padded) ----
    z = jnp.dot(h.astype(matmul_dtype), w3_ref[...],
                preferred_element_type=jnp.float32) + b3_ref[...]     # (R, P) f32

    # ---- Softmax over the channel dim (PyTorch dim=1) ----
    # Channel blocks are contiguous, sublane-aligned row groups; combine them elementwise.
    P = z.shape[1]
    z0 = z[0:n, :]
    z1 = z[n:2 * n, :]
    z2 = z[2 * n:3 * n, :]
    zm = jnp.maximum(jnp.maximum(z0, z1), z2)
    e0 = jnp.exp(z0 - zm)
    e1 = jnp.exp(z1 - zm)
    e2 = jnp.exp(z2 - zm)
    inv = 1.0 / (e0 + e1 + e2)   # exact divide: PyTorch parity; not on the bottleneck at this size

    # Three 128-aligned, unmasked, lane-dense stores (channels along lanes): no concatenate copy,
    # and the wrapper epilogue is a pure reshape (no transpose over the padded slab).
    o_ref[:, 0:P] = e0 * inv
    o_ref[:, P:2 * P] = e1 * inv
    o_ref[:, 2 * P:3 * P] = e2 * inv


def arc_nn_forward(x_ncl, w1, b1, g1, be1, w2, b2, g2, be2, w3, b3,
                   matmul_dtype=jnp.float32):
    """x_ncl: (N, 3, F_in) float32 (PyTorch layout). Returns (N, 3, out_size) float32."""
    N, Cc, F_in = x_ncl.shape
    assert Cc == C
    OUT = w3.shape[1]
    P = ((OUT + 127) // 128) * 128                 # lane-dense padded output width

    # Zero-pad the final layer so the kernel's output stores are unmasked, lane-dense tiles.
    w3p = jnp.pad(w3, ((0, 0), (0, P - OUT)))
    b3p = jnp.pad(b3, ((0, 0), (0, P - OUT)))

    # Channel-contiguous row layout (3N, F_in) so each Linear is ONE fused MXU matmul; pad rows
    # up to full LHS tiles ((16,128) for bf16 operands, (8,128) for f32).
    row_align = 16 if jnp.dtype(matmul_dtype) == jnp.dtype(jnp.bfloat16) else 8
    R = ((C * N + row_align - 1) // row_align) * row_align
    x_rows = jnp.transpose(x_ncl, (1, 0, 2)).reshape(C * N, F_in)
    x_rows = jnp.pad(x_rows, ((0, R - C * N), (0, 0)))

    # Channel indicator matrices (f32, 0 on pad rows) for the in-kernel BN stat/expand matmuls.
    r_idx = jnp.arange(R, dtype=jnp.int32)
    c_idx = jnp.arange(C, dtype=jnp.int32)
    ind = ((r_idx[None, :] >= c_idx[:, None] * N)
           & (r_idx[None, :] < (c_idx[:, None] + 1) * N)).astype(jnp.float32)   # (C, R)
    indT = ((r_idx[:, None] >= c_idx[None, :] * N)
            & (r_idx[:, None] < (c_idx[None, :] + 1) * N)).astype(jnp.float32)  # (R, C)

    kernel = functools.partial(arc_nn_kernel, N, matmul_dtype)
    vmem = pl.BlockSpec(memory_space=pltpu.MemorySpace.VMEM)

    # No grid -> single TensorCore.  BatchNorm1d needs global batch stats, so N must not be tiled;
    # to use both v7x TensorCores, add a leading "parallel" grid axis over independent instances.
    out = pl.pallas_call(
        kernel,
        out_shape=jax.ShapeDtypeStruct((N, C * P), jnp.float32),
        in_specs=[vmem] * 13,
        out_specs=vmem,
        compiler_params=pltpu.CompilerParams(vmem_limit_bytes=32 * 1024 * 1024),
    )(x_rows.astype(matmul_dtype),
      ind, indT,
      w1.astype(matmul_dtype), b1,
      g1.reshape(C, 1), be1.reshape(C, 1),
      w2.astype(matmul_dtype), b2,
      g2.reshape(C, 1), be2.reshape(C, 1),
      w3p.astype(matmul_dtype), b3p)

    # Reshape-only epilogue: (N, 3*P) -> (N, 3, P); drop the lane padding.
    return out.reshape(N, C, P)[:, :, :OUT]


def arc_nn_reference(x_ncl, w1, b1, g1, be1, w2, b2, g2, be2, w3, b3):
    """Pure-JAX reference with PyTorch training-mode BatchNorm1d semantics (all f32)."""
    hi = lax.Precision.HIGHEST

    def bn(h, g, be):   # h: (N, C, F); per-channel mean/biased-var over (N, F)
        m = jnp.mean(h, axis=(0, 2), keepdims=True)
        v = jnp.mean(jnp.square(h - m), axis=(0, 2), keepdims=True)
        return (h - m) * lax.rsqrt(v + EPS) * g.reshape(1, C, 1) + be.reshape(1, C, 1)

    h = jnp.einsum("ncf,fk->nck", x_ncl, w1, precision=hi) + b1.reshape(1, 1, -1)
    h = bn(jnp.maximum(h, 0.0), g1, be1)
    h = jnp.einsum("ncf,fk->nck", h, w2, precision=hi) + b2.reshape(1, 1, -1)
    h = bn(jnp.maximum(h, 0.0), g2, be2)
    z = jnp.einsum("ncf,fk->nck", h, w3, precision=hi) + b3.reshape(1, 1, -1)
    return jax.nn.softmax(z, axis=1)


def linear_init(key, fan_in, fan_out):
    """PyTorch nn.Linear default init, weight stored pre-transposed as (fan_in, fan_out)."""
    kw, kb = jax.random.split(key)
    bound = 1.0 / (fan_in ** 0.5)
    w = jax.random.uniform(kw, (fan_in, fan_out), jnp.float32, -bound, bound)
    b = jax.random.uniform(kb, (1, fan_out), jnp.float32, -bound, bound)
    return w, b


def _pick_matmul_dtype():
    """bf16 matmul operands on v5e/v5p/v6e/v7x (bf16-native MXU); f32 only on pre-v5 parts."""
    try:
        kind = jax.devices()[0].device_kind.lower()
    except Exception:
        return jnp.float32
    if any(tag in kind for tag in ("v2", "v3", "v4")):
        return jnp.float32
    return jnp.bfloat16


if __name__ == "__main__":
    # Small shapes consistent with the module: in_size=32, hidden=64, out=16, batch=8, channels=3.
    N, F_IN = 8, 32
    HID = F_IN * 2          # hidden_size = in_size * 2 = 64
    OUT = 16

    key = jax.random.PRNGKey(0)
    kx, k1, k2, k3 = jax.random.split(key, 4)

    x = jax.random.normal(kx, (N, C, F_IN), jnp.float32)

    w1, b1 = linear_init(k1, F_IN, 2 * HID)     # Linear(in, hidden*2)
    w2, b2 = linear_init(k2, 2 * HID, HID)      # Linear(hidden*2, hidden)
    w3, b3 = linear_init(k3, HID, OUT)          # Linear(hidden, out)

    # BatchNorm1d(3) affine params (PyTorch init: gamma=1, beta=0)
    g1 = jnp.ones((C,), jnp.float32)
    be1 = jnp.zeros((C,), jnp.float32)
    g2 = jnp.ones((C,), jnp.float32)
    be2 = jnp.zeros((C,), jnp.float32)

    args = (x, w1, b1, g1, be1, w2, b2, g2, be2, w3, b3)

    # Correctness: f32-operand kernel vs pure-JAX reference (PyTorch semantics).
    ref = jax.block_until_ready(arc_nn_reference(*args))
    out_f32 = jax.block_until_ready(arc_nn_forward(*args, matmul_dtype=jnp.float32))
    assert out_f32.shape == (N, C, OUT)
    assert bool(jnp.allclose(out_f32, ref, atol=2e-3)), float(jnp.max(jnp.abs(out_f32 - ref)))

    # Device-tuned run (bf16 MXU operands on v5e/v6e/v7x; f32 BN/softmax math).
    out = jax.block_until_ready(arc_nn_forward(*args, matmul_dtype=_pick_matmul_dtype()))
    assert out.shape == (N, C, OUT)
    # Softmax over dim=1 sums to 1 (exact divide; all softmax math in f32).
    assert bool(jnp.allclose(jnp.sum(out, axis=1), 1.0, atol=1e-5))
    assert bool(jnp.all(jnp.isfinite(out)))

    print("KERNEL_OK")
</pallas_src>

<mosaic_0001>
module attributes {stable_mosaic.version = 11 : i64} {
  func.func @arc_nn_kernel(%arg0: memref<24x32xf32, #tpu.memory_space<vmem>>, %arg1: memref<3x24xf32, #tpu.memory_space<vmem>>, %arg2: memref<24x3xf32, #tpu.memory_space<vmem>>, %arg3: memref<32x128xf32, #tpu.memory_space<vmem>>, %arg4: memref<1x128xf32, #tpu.memory_space<vmem>>, %arg5: memref<3x1xf32, #tpu.memory_space<vmem>>, %arg6: memref<3x1xf32, #tpu.memory_space<vmem>>, %arg7: memref<128x64xf32, #tpu.memory_space<vmem>>, %arg8: memref<1x64xf32, #tpu.memory_space<vmem>>, %arg9: memref<3x1xf32, #tpu.memory_space<vmem>>, %arg10: memref<3x1xf32, #tpu.memory_space<vmem>>, %arg11: memref<64x128xf32, #tpu.memory_space<vmem>>, %arg12: memref<1x128xf32, #tpu.memory_space<vmem>>, %arg13: memref<8x384xf32, #tpu.memory_space<vmem>>) attributes {dimension_semantics = [], scalar_prefetch = 0 : i64, scratch_operands = 0 : i64, tpu.core_type = #tpu.core_type<tc>} {
    %c0 = arith.constant 0 : index
    %c0_0 = arith.constant 0 : index
    %0 = vector.load %arg1[%c0, %c0_0] : memref<3x24xf32, #tpu.memory_space<vmem>>, vector<3x24xf32>
    %c0_1 = arith.constant 0 : index
    %c0_2 = arith.constant 0 : index
    %1 = vector.load %arg2[%c0_1, %c0_2] : memref<24x3xf32, #tpu.memory_space<vmem>>, vector<24x3xf32>
    %c0_3 = arith.constant 0 : index
    %c0_4 = arith.constant 0 : index
    %2 = vector.load %arg0[%c0_3, %c0_4] : memref<24x32xf32, #tpu.memory_space<vmem>>, vector<24x32xf32>
    %c0_5 = arith.constant 0 : index
    %c0_6 = arith.constant 0 : index
    %3 = vector.load %arg3[%c0_5, %c0_6] : memref<32x128xf32, #tpu.memory_space<vmem>>, vector<32x128xf32>
    %cst = arith.constant dense<0.000000e+00> : vector<24x128xf32>
    %4 = tpu.matmul %2, %3, %cst {dimension_numbers = #tpu.dot_dimension_numbers<[1], [0], [0], [1], [0, 0, 1, 1], [], []>} : vector<24x32xf32>, vector<32x128xf32>, vector<24x128xf32> -> vector<24x128xf32>
    %c0_7 = arith.constant 0 : index
    %c0_8 = arith.constant 0 : index
    %5 = vector.load %arg4[%c0_7, %c0_8] : memref<1x128xf32, #tpu.memory_space<vmem>>, vector<1x128xf32>
    %6 = vector.broadcast %5 : vector<1x128xf32> to vector<24x128xf32>
    %7 = arith.addf %4, %6 : vector<24x128xf32>
    %cst_9 = arith.constant 0.000000e+00 : f32
    %8 = vector.broadcast %cst_9 : f32 to vector<24x128xf32>
    %9 = arith.maximumf %7, %8 : vector<24x128xf32>
    %c0_10 = arith.constant 0 : index
    %c0_11 = arith.constant 0 : index
    %10 = vector.load %arg5[%c0_10, %c0_11] : memref<3x1xf32, #tpu.memory_space<vmem>>, vector<3x1xf32>
    %c0_12 = arith.constant 0 : index
    %c0_13 = arith.constant 0 : index
    %11 = vector.load %arg6[%c0_12, %c0_13] : memref<3x1xf32, #tpu.memory_space<vmem>>, vector<3x1xf32>
    %cst_14 = arith.constant dense<0.000000e+00> : vector<24xf32>
    %12 = vector.multi_reduction <add>, %9, %cst_14 [1] : vector<24x128xf32> to vector<24xf32>
    %13 = vector.shape_cast %12 : vector<24xf32> to vector<24x1xf32>
    %14 = arith.mulf %9, %9 : vector<24x128xf32>
    %cst_15 = arith.constant dense<0.000000e+00> : vector<24xf32>
    %15 = vector.multi_reduction <add>, %14, %cst_15 [1] : vector<24x128xf32> to vector<24xf32>
    %16 = vector.shape_cast %15 : vector<24xf32> to vector<24x1xf32>
    %cst_16 = arith.constant dense<0.000000e+00> : vector<3x1xf32>
    %17 = tpu.matmul %0, %13, %cst_16 {dimension_numbers = #tpu.dot_dimension_numbers<[1], [0], [0], [1], [0, 0, 1, 1], [], []>} : vector<3x24xf32>, vector<24x1xf32>, vector<3x1xf32> -> vector<3x1xf32>
    %cst_17 = arith.constant dense<0.000000e+00> : vector<3x1xf32>
    %18 = tpu.matmul %0, %16, %cst_17 {dimension_numbers = #tpu.dot_dimension_numbers<[1], [0], [0], [1], [0, 0, 1, 1], [], []>} : vector<3x24xf32>, vector<24x1xf32>, vector<3x1xf32> -> vector<3x1xf32>
    %cst_18 = arith.constant 9.765625E-4 : f32
    %19 = vector.broadcast %cst_18 : f32 to vector<3x1xf32>
    %20 = arith.mulf %17, %19 : vector<3x1xf32>
    %cst_19 = arith.constant 9.765625E-4 : f32
    %21 = vector.broadcast %cst_19 : f32 to vector<3x1xf32>
    %22 = arith.mulf %18, %21 : vector<3x1xf32>
    %23 = arith.mulf %20, %20 : vector<3x1xf32>
    %24 = arith.subf %22, %23 : vector<3x1xf32>
    %cst_20 = arith.constant 0.000000e+00 : f32
    %25 = vector.broadcast %cst_20 : f32 to vector<3x1xf32>
    %26 = arith.maximumf %24, %25 : vector<3x1xf32>
    %cst_21 = arith.constant 9.99999974E-6 : f32
    %27 = vector.broadcast %cst_21 : f32 to vector<3x1xf32>
    %28 = arith.addf %26, %27 : vector<3x1xf32>
    %29 = math.rsqrt %28 : vector<3x1xf32>
    %30 = arith.mulf %10, %29 : vector<3x1xf32>
    %31 = arith.mulf %20, %30 : vector<3x1xf32>
    %32 = arith.subf %11, %31 : vector<3x1xf32>
    %cst_22 = arith.constant dense<0.000000e+00> : vector<24x1xf32>
    %33 = tpu.matmul %1, %30, %cst_22 {dimension_numbers = #tpu.dot_dimension_numbers<[1], [0], [0], [1], [0, 0, 1, 1], [], []>} : vector<24x3xf32>, vector<3x1xf32>, vector<24x1xf32> -> vector<24x1xf32>
    %cst_23 = arith.constant dense<0.000000e+00> : vector<24x1xf32>
    %34 = tpu.matmul %1, %32, %cst_23 {dimension_numbers = #tpu.dot_dimension_numbers<[1], [0], [0], [1], [0, 0, 1, 1], [], []>} : vector<24x3xf32>, vector<3x1xf32>, vector<24x1xf32> -> vector<24x1xf32>
    %35 = vector.broadcast %33 : vector<24x1xf32> to vector<24x128xf32>
    %36 = arith.mulf %9, %35 : vector<24x128xf32>
    %37 = vector.broadcast %34 : vector<24x1xf32> to vector<24x128xf32>
    %38 = arith.addf %36, %37 : vector<24x128xf32>
    %c0_24 = arith.constant 0 : index
    %c0_25 = arith.constant 0 : index
    %39 = vector.load %arg7[%c0_24, %c0_25] : memref<128x64xf32, #tpu.memory_space<vmem>>, vector<128x64xf32>
    %cst_26 = arith.constant dense<0.000000e+00> : vector<24x64xf32>
    %40 = tpu.matmul %38, %39, %cst_26 {dimension_numbers = #tpu.dot_dimension_numbers<[1], [0], [0], [1], [0, 0, 1, 1], [], []>} : vector<24x128xf32>, vector<128x64xf32>, vector<24x64xf32> -> vector<24x64xf32>
    %c0_27 = arith.constant 0 : index
    %c0_28 = arith.constant 0 : index
    %41 = vector.load %arg8[%c0_27, %c0_28] : memref<1x64xf32, #tpu.memory_space<vmem>>, vector<1x64xf32>
    %42 = vector.broadcast %41 : vector<1x64xf32> to vector<24x64xf32>
    %43 = arith.addf %40, %42 : vector<24x64xf32>
    %cst_29 = arith.constant 0.000000e+00 : f32
    %44 = vector.broadcast %cst_29 : f32 to vector<24x64xf32>
    %45 = arith.maximumf %43, %44 : vector<24x64xf32>
    %c0_30 = arith.constant 0 : index
    %c0_31 = arith.constant 0 : index
    %46 = vector.load %arg9[%c0_30, %c0_31] : memref<3x1xf32, #tpu.memory_space<vmem>>, vector<3x1xf32>
    %c0_32 = arith.constant 0 : index
    %c0_33 = arith.constant 0 : index
    %47 = vector.load %arg10[%c0_32, %c0_33] : memref<3x1xf32, #tpu.memory_space<vmem>>, vector<3x1xf32>
    %cst_34 = arith.constant dense<0.000000e+00> : vector<24xf32>
    %48 = vector.multi_reduction <add>, %45, %cst_34 [1] : vector<24x64xf32> to vector<24xf32>
    %49 = vector.shape_cast %48 : vector<24xf32> to vector<24x1xf32>
    %50 = arith.mulf %45, %45 : vector<24x64xf32>
    %cst_35 = arith.constant dense<0.000000e+00> : vector<24xf32>
    %51 = vector.multi_reduction <add>, %50, %cst_35 [1] : vector<24x64xf32> to vector<24xf32>
    %52 = vector.shape_cast %51 : vector<24xf32> to vector<24x1xf32>
    %cst_36 = arith.constant dense<0.000000e+00> : vector<3x1xf32>
    %53 = tpu.matmul %0, %49, %cst_36 {dimension_numbers = #tpu.dot_dimension_numbers<[1], [0], [0], [1], [0, 0, 1, 1], [], []>} : vector<3x24xf32>, vector<24x1xf32>, vector<3x1xf32> -> vector<3x1xf32>
    %cst_37 = arith.constant dense<0.000000e+00> : vector<3x1xf32>
    %54 = tpu.matmul %0, %52, %cst_37 {dimension_numbers = #tpu.dot_dimension_numbers<[1], [0], [0], [1], [0, 0, 1, 1], [], []>} : vector<3x24xf32>, vector<24x1xf32>, vector<3x1xf32> -> vector<3x1xf32>
    %cst_38 = arith.constant 0.001953125 : f32
    %55 = vector.broadcast %cst_38 : f32 to vector<3x1xf32>
    %56 = arith.mulf %53, %55 : vector<3x1xf32>
    %cst_39 = arith.constant 0.001953125 : f32
    %57 = vector.broadcast %cst_39 : f32 to vector<3x1xf32>
    %58 = arith.mulf %54, %57 : vector<3x1xf32>
    %59 = arith.mulf %56, %56 : vector<3x1xf32>
    %60 = arith.subf %58, %59 : vector<3x1xf32>
    %cst_40 = arith.constant 0.000000e+00 : f32
    %61 = vector.broadcast %cst_40 : f32 to vector<3x1xf32>
    %62 = arith.maximumf %60, %61 : vector<3x1xf32>
    %cst_41 = arith.constant 9.99999974E-6 : f32
    %63 = vector.broadcast %cst_41 : f32 to vector<3x1xf32>
    %64 = arith.addf %62, %63 : vector<3x1xf32>
    %65 = math.rsqrt %64 : vector<3x1xf32>
    %66 = arith.mulf %46, %65 : vector<3x1xf32>
    %67 = arith.mulf %56, %66 : vector<3x1xf32>
    %68 = arith.subf %47, %67 : vector<3x1xf32>
    %cst_42 = arith.constant dense<0.000000e+00> : vector<24x1xf32>
    %69 = tpu.matmul %1, %66, %cst_42 {dimension_numbers = #tpu.dot_dimension_numbers<[1], [0], [0], [1], [0, 0, 1, 1], [], []>} : vector<24x3xf32>, vector<3x1xf32>, vector<24x1xf32> -> vector<24x1xf32>
    %cst_43 = arith.constant dense<0.000000e+00> : vector<24x1xf32>
    %70 = tpu.matmul %1, %68, %cst_43 {dimension_numbers = #tpu.dot_dimension_numbers<[1], [0], [0], [1], [0, 0, 1, 1], [], []>} : vector<24x3xf32>, vector<3x1xf32>, vector<24x1xf32> -> vector<24x1xf32>
    %71 = vector.broadcast %69 : vector<24x1xf32> to vector<24x64xf32>
    %72 = arith.mulf %45, %71 : vector<24x64xf32>
    %73 = vector.broadcast %70 : vector<24x1xf32> to vector<24x64xf32>
    %74 = arith.addf %72, %73 : vector<24x64xf32>
    %c0_44 = arith.constant 0 : index
    %c0_45 = arith.constant 0 : index
    %75 = vector.load %arg11[%c0_44, %c0_45] : memref<64x128xf32, #tpu.memory_space<vmem>>, vector<64x128xf32>
    %cst_46 = arith.constant dense<0.000000e+00> : vector<24x128xf32>
    %76 = tpu.matmul %74, %75, %cst_46 {dimension_numbers = #tpu.dot_dimension_numbers<[1], [0], [0], [1], [0, 0, 1, 1], [], []>} : vector<24x64xf32>, vector<64x128xf32>, vector<24x128xf32> -> vector<24x128xf32>
    %c0_47 = arith.constant 0 : index
    %c0_48 = arith.constant 0 : index
    %77 = vector.load %arg12[%c0_47, %c0_48] : memref<1x128xf32, #tpu.memory_space<vmem>>, vector<1x128xf32>
    %78 = vector.broadcast %77 : vector<1x128xf32> to vector<24x128xf32>
    %79 = arith.addf %76, %78 : vector<24x128xf32>
    %80 = vector.extract_strided_slice %79 {offsets = [0, 0], sizes = [8, 128], strides = [1, 1]} : vector<24x128xf32> to vector<8x128xf32>
    %81 = vector.extract_strided_slice %79 {offsets = [8, 0], sizes = [8, 128], strides = [1, 1]} : vector<24x128xf32> to vector<8x128xf32>
    %82 = vector.extract_strided_slice %79 {offsets = [16, 0], sizes = [8, 128], strides = [1, 1]} : vector<24x128xf32> to vector<8x128xf32>
    %83 = arith.maximumf %80, %81 : vector<8x128xf32>
    %84 = arith.maximumf %83, %82 : vector<8x128xf32>
    %85 = arith.subf %80, %84 : vector<8x128xf32>
    %86 = math.exp %85 : vector<8x128xf32>
    %87 = arith.subf %81, %84 : vector<8x128xf32>
    %88 = math.exp %87 : vector<8x128xf32>
    %89 = arith.subf %82, %84 : vector<8x128xf32>
    %90 = math.exp %89 : vector<8x128xf32>
    %91 = arith.addf %86, %88 : vector<8x128xf32>
    %92 = arith.addf %91, %90 : vector<8x128xf32>
    %cst_49 = arith.constant 1.000000e+00 : f32
    %93 = vector.broadcast %cst_49 : f32 to vector<8x128xf32>
    %94 = arith.divf %93, %92 : vector<8x128xf32>
    %95 = arith.mulf %86, %94 : vector<8x128xf32>
    %c0_50 = arith.constant 0 : index
    %c0_51 = arith.constant 0 : index
    %96 = vector.load %arg13[%c0_50, %c0_51] : memref<8x384xf32, #tpu.memory_space<vmem>>, vector<8x128xf32>
    tpu.vector_store %arg13[%c0_50, %c0_51], %95 {strides = array<i32>} : memref<8x384xf32, #tpu.memory_space<vmem>>, vector<8x128xf32>,
    %97 = arith.mulf %88, %94 : vector<8x128xf32>
    %c0_52 = arith.constant 0 : index
    %c128 = arith.constant 128 : index
    %98 = vector.load %arg13[%c0_52, %c128] : memref<8x384xf32, #tpu.memory_space<vmem>>, vector<8x128xf32>
    tpu.vector_store %arg13[%c0_52, %c128], %97 {strides = array<i32>} : memref<8x384xf32, #tpu.memory_space<vmem>>, vector<8x128xf32>,
    %99 = arith.mulf %90, %94 : vector<8x128xf32>
    %c0_53 = arith.constant 0 : index
    %c256 = arith.constant 256 : index
    %100 = vector.load %arg13[%c0_53, %c256] : memref<8x384xf32, #tpu.memory_space<vmem>>, vector<8x128xf32>
    tpu.vector_store %arg13[%c0_53, %c256], %99 {strides = array<i32>} : memref<8x384xf32, #tpu.memory_space<vmem>>, vector<8x128xf32>,
    return
  }
}

</mosaic_0001>

<llo_original>
// kernel: tpu_custom_call.1
$region0: #{tpu_custom_call.1}
  #allocation0 [shape = 'u32[]', space=smem, size = 0x4, offset = 0x4, fixed_abs, tag = 'smem constant byte address 0x4 - core index']
  #allocation1 [shape = 'u32[144,128]{1,0:T(1,128)}', space=vmem, size = 0x12000, scoped, tag = 'internal scratch']
  %s0 = inlined_call_operand.vmem [shape: f32[24,32], index: 0, kind: input, shape index: {}]
  %s1 = inlined_call_operand.vmem [shape: f32[3,24], index: 1, kind: input, shape index: {}]
  %s2 = inlined_call_operand.vmem [shape: f32[24,3], index: 2, kind: input, shape index: {}]
  %s3 = inlined_call_operand.vmem [shape: f32[32,128], index: 3, kind: input, shape index: {}]
  %s4 = inlined_call_operand.vmem [shape: f32[1,128], index: 4, kind: input, shape index: {}]
  %s5 = inlined_call_operand.vmem [shape: f32[3,1], index: 5, kind: input, shape index: {}]
  %s6 = inlined_call_operand.vmem [shape: f32[3,1], index: 6, kind: input, shape index: {}]
  %s7 = inlined_call_operand.vmem [shape: f32[128,64], index: 7, kind: input, shape index: {}]
  %s8 = inlined_call_operand.vmem [shape: f32[1,64], index: 8, kind: input, shape index: {}]
  %s9 = inlined_call_operand.vmem [shape: f32[3,1], index: 9, kind: input, shape index: {}]
  %s10 = inlined_call_operand.vmem [shape: f32[3,1], index: 10, kind: input, shape index: {}]
  %s11 = inlined_call_operand.vmem [shape: f32[64,128], index: 11, kind: input, shape index: {}]
  %s12 = inlined_call_operand.vmem [shape: f32[1,128], index: 12, kind: input, shape index: {}]
  %s13 = inlined_call_operand.hbm [shape: f32[8,384], index: 13, kind: output, shape index: {}]
  %s14 = sld [smem:[#allocation0]]
  $region62: #{tpu_custom_call.1} parent=0
    _
  %s16 = ssub.s32 1, %s14
  %s17 = scalar_select 0, %s16, %s14
  $region1: #{tpu_custom_call.1} parent=0
    #allocation2 [shape = 'u8[12288]{0}', space=vmem, size = 0x3000, scoped, tag = 'output window, operand 0, single buffered']
    #allocation3 [shape = 's32[1]{0}', space=sflag, size = 0x4, scoped, tag = 'scoped memory for tpu_custom_call.1']
    %18 = vsyncpa [#allocation3], 0
    // Predicated region
    $region2: #{tpu_custom_call.1} parent=1 // pred_check
      _
    $region3: #{tpu_custom_call.1} parent=1 // pred_check_branch
      %20 = sbr.rel (0) target = $region5
    $region4: #{tpu_custom_call.1} parent=1 // pred_region
      _
    $region5: #{tpu_custom_call.1} parent=1 // pred_fallthru
      _
    // Predicated region
    $region6: #{tpu_custom_call.1} parent=1 // pred_check
      _
    $region7: #{tpu_custom_call.1} parent=1 // pred_check_branch
      %22 = sbr.rel (0) target = $region9
    $region8: #{tpu_custom_call.1} parent=1 // pred_region
      _
    $region9: #{tpu_custom_call.1} parent=1 // pred_fallthru
      _
    // Predicated region
    $region10: #{tpu_custom_call.1} parent=1 // pred_check
      _
    $region11: #{tpu_custom_call.1} parent=1 // pred_check_branch
      %24 = sbr.rel (0) target = $region13
    $region12: #{tpu_custom_call.1} parent=1 // pred_region
      _
    $region13: #{tpu_custom_call.1} parent=1 // pred_fallthru
      _
    // Predicated region
    $region14: #{tpu_custom_call.1} parent=1 // pred_check
      _
    $region15: #{tpu_custom_call.1} parent=1 // pred_check_branch
      %26 = sbr.rel (0) target = $region17
    $region16: #{tpu_custom_call.1} parent=1 // pred_region
      _
    $region17: #{tpu_custom_call.1} parent=1 // pred_fallthru
      _
    // Predicated region
    $region18: #{tpu_custom_call.1} parent=1 // pred_check
      _
    $region19: #{tpu_custom_call.1} parent=1 // pred_check_branch
      %28 = sbr.rel (0) target = $region21
    $region20: #{tpu_custom_call.1} parent=1 // pred_region
      _
    $region21: #{tpu_custom_call.1} parent=1 // pred_fallthru
      _
    // Predicated region
    $region22: #{tpu_custom_call.1} parent=1 // pred_check
      _
    $region23: #{tpu_custom_call.1} parent=1 // pred_check_branch
      %30 = sbr.rel (0) target = $region25
    $region24: #{tpu_custom_call.1} parent=1 // pred_region
      _
    $region25: #{tpu_custom_call.1} parent=1 // pred_fallthru
      _
    // Predicated region
    $region26: #{tpu_custom_call.1} parent=1 // pred_check
      _
    $region27: #{tpu_custom_call.1} parent=1 // pred_check_branch
      %32 = sbr.rel (0) target = $region29
    $region28: #{tpu_custom_call.1} parent=1 // pred_region
      _
    $region29: #{tpu_custom_call.1} parent=1 // pred_fallthru
      _
    // Predicated region
    $region30: #{tpu_custom_call.1} parent=1 // pred_check
      _
    $region31: #{tpu_custom_call.1} parent=1 // pred_check_branch
      %34 = sbr.rel (0) target = $region33
    $region32: #{tpu_custom_call.1} parent=1 // pred_region
      _
    $region33: #{tpu_custom_call.1} parent=1 // pred_fallthru
      _
    // Predicated region
    $region34: #{tpu_custom_call.1} parent=1 // pred_check
      _
    $region35: #{tpu_custom_call.1} parent=1 // pred_check_branch
      %36 = sbr.rel (0) target = $region37
    $region36: #{tpu_custom_call.1} parent=1 // pred_region
      _
    $region37: #{tpu_custom_call.1} parent=1 // pred_fallthru
      _
    // Predicated region
    $region38: #{tpu_custom_call.1} parent=1 // pred_check
      _
    $region39: #{tpu_custom_call.1} parent=1 // pred_check_branch
      %38 = sbr.rel (0) target = $region41
    $region40: #{tpu_custom_call.1} parent=1 // pred_region
      _
    $region41: #{tpu_custom_call.1} parent=1 // pred_fallthru
      _
    // Predicated region
    $region42: #{tpu_custom_call.1} parent=1 // pred_check
      _
    $region43: #{tpu_custom_call.1} parent=1 // pred_check_branch
      %40 = sbr.rel (0) target = $region45
    $region44: #{tpu_custom_call.1} parent=1 // pred_region
      _
    $region45: #{tpu_custom_call.1} parent=1 // pred_fallthru
      _
    // Predicated region
    $region46: #{tpu_custom_call.1} parent=1 // pred_check
      _
    $region47: #{tpu_custom_call.1} parent=1 // pred_check_branch
      %42 = sbr.rel (0) target = $region49
    $region48: #{tpu_custom_call.1} parent=1 // pred_region
      _
    $region49: #{tpu_custom_call.1} parent=1 // pred_fallthru
      _
    // Predicated region
    $region50: #{tpu_custom_call.1} parent=1 // pred_check
      _
    $region51: #{tpu_custom_call.1} parent=1 // pred_check_branch
      %44 = sbr.rel (0) target = $region53
    $region52: #{tpu_custom_call.1} parent=1 // pred_region
      _
    $region53: #{tpu_custom_call.1} parent=1 // pred_fallthru
      _
    %v45 = vld [vmem:[%s1] sm:$0x7]
    %v46 = vld [vmem:[%s2] sm:$0xff]
    %v47 = vld [vmem:[%s2 + $0x8] sm:$0xff]
    %v48 = vld [vmem:[%s2 + $0x10] sm:$0xff]
    %v49 = vld [vmem:[%s0] sm:$0xff]
    %v50 = vld [vmem:[%s0 + $0x8] sm:$0xff]
    %v51 = vld [vmem:[%s0 + $0x10] sm:$0xff]
    %v52 = vld [vmem:[%s3] sm:$0xff]
    %v53 = vld [vmem:[%s3 + $0x8] sm:$0xff]
    %v54 = vld [vmem:[%s3 + $0x10] sm:$0xff]
    %v55 = vld [vmem:[%s3 + $0x18] sm:$0xff]
    %v56 = vld [vmem:[%s4] sm:$0x1]
    %v58 = vlaneseq
    %v59 = vshrl.u32 %v58, 7
    %v60 = vsub.s32 0, %v59
    %v61 = vrot.slane %v56, %v60
    %vm63 = vcmask 261120
    %v65 = vsel %vm63, %v49, 0
    %v68 = vsel %vm63, %v50, 0
    %v71 = vsel %vm63, %v51, 0
    %73 = vmatprep.subr.mxu0 0.0
    %74 = vmatpush1.msra.mxu0 %v52
    %75 = vmatprep.subr.mxu0 0.0
    %76 = vmatpush1.msra.mxu0 %v53
    %77 = vmatprep.subr.mxu0 0.0
    %78 = vmatpush1.msra.mxu0 %v54
    %79 = vmatprep.subr.mxu0 0.0
    %80 = vmatpush1.msra.mxu0 %v55
    %81 = vmatprep.subr.mxu0 0.0
    %82 = vmatpush1.msra.mxu0 0.0
    %83 = vmatprep.subr.mxu0 0.0
    %84 = vmatpush1.msra.mxu0 0.0
    %85 = vmatprep.subr.mxu0 0.0
    %86 = vmatpush1.msra.mxu0 0.0
    %87 = vmatprep.subr.mxu0 0.0
    %88 = vmatpush1.msra.mxu0 0.0
    %89 = vmatprep.subr.mxu0 0.0
    %90 = vmatpush1.msra.mxu0 0.0
    %91 = vmatprep.subr.mxu0 0.0
    %92 = vmatpush1.msra.mxu0 0.0
    %93 = vmatprep.subr.mxu0 0.0
    %94 = vmatpush1.msra.mxu0 0.0
    %95 = vmatprep.subr.mxu0 0.0
    %96 = vmatpush1.msra.mxu0 0.0
    %97 = vmatprep.subr.mxu0 0.0
    %98 = vmatpush1.msra.mxu0 0.0
    %99 = vmatprep.subr.mxu0 0.0
    %100 = vmatpush1.msra.mxu0 0.0
    %101 = vmatprep.subr.mxu0 0.0
    %102 = vmatpush1.msra.mxu0 0.0
    %103 = vmatprep.subr.mxu0 0.0
    %104 = vmatpush1.msra.mxu0 0.0
    %105 = vmatprep.subr.mxu0 0.0
    %106 = vmatpush1.msra.mxu0 0.0
    %107 = vmatprep.subr.mxu0 0.0
    %108 = vmatpush1.msra.mxu0 0.0
    %109 = vmatprep.subr.mxu0 0.0
    %110 = vmatpush1.msra.mxu0 0.0
    %111 = vmatprep.subr.mxu0 0.0
    %112 = vmatpush1.msra.mxu0 0.0
    %113 = vmatprep.subr.mxu0 0.0
    %114 = vmatpush1.msra.mxu0 0.0
    %115 = vmatprep.subr.mxu0 0.0
    %116 = vmatpush1.msra.mxu0 0.0
    %117 = vmatprep.subr.mxu0 0.0
    %118 = vmatpush1.msra.mxu0 0.0
    %119 = vmatprep.subr.mxu0 0.0
    %120 = vmatpush1.msra.mxu0 0.0
    %121 = vmatprep.subr.mxu0 0.0
    %122 = vmatpush1.msra.mxu0 0.0
    %123 = vmatprep.subr.mxu0 0.0
    %124 = vmatpush1.msra.mxu0 0.0
    %125 = vmatprep.subr.mxu0 0.0
    %126 = vmatpush1.msra.mxu0 0.0
    %127 = vmatprep.subr.mxu0 0.0
    %128 = vmatpush1.msra.mxu0 0.0
    %129 = vmatprep.subr.mxu0 0.0
    %130 = vmatpush1.msra.mxu0 0.0
    %131 = vmatprep.subr.mxu0 0.0
    %132 = vmatpush1.msra.mxu0 0.0
    %133 = vmatprep.subr.mxu0 0.0
    %134 = vmatpush1.msra.mxu0 0.0
    %135 = vmatprep.subr.mxu0 0.0
    %136 = vmatpush1.msra.mxu0 0.0
    %137 = vmatprep.mubr.f32.mxu0 0.0
    %138 = vmatmul.mubr.f32.gmra.mrb[0].mxu0 %v65
    %v139 = vpop.f32.mrb[0].mxu0
    %v140 = vadd.f32 %v61, %v139
    %v141 = vpop.f32.mrb[0].mxu0
    %142 = vmatprep.mubr.f32.mxu0 0.0
    %143 = vmatmul.mubr.f32.gmra.mrb[0].mxu0 %v68
    %v144 = vpop.f32.mrb[0].mxu0
    %v145 = vadd.f32 %v61, %v144
    %v146 = vpop.f32.mrb[0].mxu0
    %147 = vmatprep.mubr.f32.mxu0 0.0
    %148 = vmatmul.mubr.f32.gmra.mrb[0].mxu0 %v71
    %v149 = vpop.f32.mrb[0].mxu0
    %v150 = vadd.f32 %v61, %v149
    %v151 = vpop.f32.mrb[0].mxu0
    %152 = vdwg.mxu0
    %v153 = vmax.f32 %v140, 0.0
    %v154 = vmax.f32 %v145, 0.0
    %v155 = vmax.f32 %v150, 0.0
    %v156 = vld [vmem:[%s5] sm:$0x7]
    %v157 = vld [vmem:[%s6] sm:$0x7]
    %158 = vadd.xlane.f32.xlu0 %v153
    %v159 = vpop.xlane.xlu0 %158
    %160 = vadd.xlane.f32.xlu0 %v154
    %v161 = vpop.xlane.xlu0 %160
    %162 = vadd.xlane.f32.xlu0 %v155
    %v163 = vpop.xlane.xlu0 %162
    %v164 = vmul.f32 %v153, %v153
    %v165 = vmul.f32 %v154, %v154
    %v166 = vmul.f32 %v155, %v155
    %167 = vadd.xlane.f32.xlu0 %v164
    %v168 = vpop.xlane.xlu0 %167
    %169 = vadd.xlane.f32.xlu0 %v165
    %v170 = vpop.xlane.xlu0 %169
    %171 = vadd.xlane.f32.xlu0 %v166
    %v172 = vpop.xlane.xlu0 %171
    %vm173 = vcmask 195584
    %v175 = vsel %vm173, %v45, 0
    %177 = vmatprep.subr.mxu0 0.0
    %178 = vmatpush1.msra.mxu0 %v159
    %179 = vmatprep.subr.mxu0 0.0
    %180 = vmatpush1.msra.mxu0 %v161
    %181 = vmatprep.subr.mxu0 0.0
    %182 = vmatpush1.msra.mxu0 %v163
    %183 = vmatprep.subr.mxu0 0.0
    %184 = vmatpush1.msra.mxu0 0.0
    %185 = vmatprep.subr.mxu0 0.0
    %186 = vmatpush1.msra.mxu0 0.0
    %187 = vmatprep.subr.mxu0 0.0
    %188 = vmatpush1.msra.mxu0 0.0
    %189 = vmatprep.subr.mxu0 0.0
    %190 = vmatpush1.msra.mxu0 0.0
    %191 = vmatprep.subr.mxu0 0.0
    %192 = vmatpush1.msra.mxu0 0.0
    %193 = vmatprep.subr.mxu0 0.0
    %194 = vmatpush1.msra.mxu0 0.0
    %195 = vmatprep.subr.mxu0 0.0
    %196 = vmatpush1.msra.mxu0 0.0
    %197 = vmatprep.subr.mxu0 0.0
    %198 = vmatpush1.msra.mxu0 0.0
    %199 = vmatprep.subr.mxu0 0.0
    %200 = vmatpush1.msra.mxu0 0.0
    %201 = vmatprep.subr.mxu0 0.0
    %202 = vmatpush1.msra.mxu0 0.0
    %203 = vmatprep.subr.mxu0 0.0
    %204 = vmatpush1.msra.mxu0 0.0
    %205 = vmatprep.subr.mxu0 0.0
    %206 = vmatpush1.msra.mxu0 0.0
    %207 = vmatprep.subr.mxu0 0.0
    %208 = vmatpush1.msra.mxu0 0.0
    %209 = vmatprep.subr.mxu0 0.0
    %210 = vmatpush1.msra.mxu0 0.0
    %211 = vmatprep.subr.mxu0 0.0
    %212 = vmatpush1.msra.mxu0 0.0
    %213 = vmatprep.subr.mxu0 0.0
    %214 = vmatpush1.msra.mxu0 0.0
    %215 = vmatprep.subr.mxu0 0.0
    %216 = vmatpush1.msra.mxu0 0.0
    %217 = vmatprep.subr.mxu0 0.0
    %218 = vmatpush1.msra.mxu0 0.0
    %219 = vmatprep.subr.mxu0 0.0
    %220 = vmatpush1.msra.mxu0 0.0
    %221 = vmatprep.subr.mxu0 0.0
    %222 = vmatpush1.msra.mxu0 0.0
    %223 = vmatprep.subr.mxu0 0.0
    %224 = vmatpush1.msra.mxu0 0.0
    %225 = vmatprep.subr.mxu0 0.0
    %226 = vmatpush1.msra.mxu0 0.0
    %227 = vmatprep.subr.mxu0 0.0
    %228 = vmatpush1.msra.mxu0 0.0
    %229 = vmatprep.subr.mxu0 0.0
    %230 = vmatpush1.msra.mxu0 0.0
    %231 = vmatprep.subr.mxu0 0.0
    %232 = vmatpush1.msra.mxu0 0.0
    %233 = vmatprep.subr.mxu0 0.0
    %234 = vmatpush1.msra.mxu0 0.0
    %235 = vmatprep.subr.mxu0 0.0
    %236 = vmatpush1.msra.mxu0 0.0
    %237 = vmatprep.subr.mxu0 0.0
    %238 = vmatpush1.msra.mxu0 0.0
    %239 = vmatprep.subr.mxu0 0.0
    %240 = vmatpush1.msra.mxu0 0.0
    %241 = vmatprep.mubr.f32.mxu0 0.0
    %242 = vmatmul.mubr.f32.gmra.mrb[0].mxu0 %v175
    %v243 = vpop.f32.mrb[0].mxu0
    %v244 = vadd.f32 0.0, %v243
    %v245 = vpop.f32.mrb[0].mxu0
    %246 = vdwg.mxu0
    %247 = vmatprep.subr.mxu0 0.0
    %248 = vmatpush1.msra.mxu0 %v168
    %249 = vmatprep.subr.mxu0 0.0
    %250 = vmatpush1.msra.mxu0 %v170
    %251 = vmatprep.subr.mxu0 0.0
    %252 = vmatpush1.msra.mxu0 %v172
    %253 = vmatprep.subr.mxu0 0.0
    %254 = vmatpush1.msra.mxu0 0.0
    %255 = vmatprep.subr.mxu0 0.0
    %256 = vmatpush1.msra.mxu0 0.0
    %257 = vmatprep.subr.mxu0 0.0
    %258 = vmatpush1.msra.mxu0 0.0
    %259 = vmatprep.subr.mxu0 0.0
    %260 = vmatpush1.msra.mxu0 0.0
    %261 = vmatprep.subr.mxu0 0.0
    %262 = vmatpush1.msra.mxu0 0.0
    %263 = vmatprep.subr.mxu0 0.0
    %264 = vmatpush1.msra.mxu0 0.0
    %265 = vmatprep.subr.mxu0 0.0
    %266 = vmatpush1.msra.mxu0 0.0
    %267 = vmatprep.subr.mxu0 0.0
    %268 = vmatpush1.msra.mxu0 0.0
    %269 = vmatprep.subr.mxu0 0.0
    %270 = vmatpush1.msra.mxu0 0.0
    %271 = vmatprep.subr.mxu0 0.0
    %272 = vmatpush1.msra.mxu0 0.0
    %273 = vmatprep.subr.mxu0 0.0
    %274 = vmatpush1.msra.mxu0 0.0
    %275 = vmatprep.subr.mxu0 0.0
    %276 = vmatpush1.msra.mxu0 0.0
    %277 = vmatprep.subr.mxu0 0.0
    %278 = vmatpush1.msra.mxu0 0.0
    %279 = vmatprep.subr.mxu0 0.0
    %280 = vmatpush1.msra.mxu0 0.0
    %281 = vmatprep.subr.mxu0 0.0
    %282 = vmatpush1.msra.mxu0 0.0
    %283 = vmatprep.subr.mxu0 0.0
    %284 = vmatpush1.msra.mxu0 0.0
    %285 = vmatprep.subr.mxu0 0.0
    %286 = vmatpush1.msra.mxu0 0.0
    %287 = vmatprep.subr.mxu0 0.0
    %288 = vmatpush1.msra.mxu0 0.0
    %289 = vmatprep.subr.mxu0 0.0
    %290 = vmatpush1.msra.mxu0 0.0
    %291 = vmatprep.subr.mxu0 0.0
    %292 = vmatpush1.msra.mxu0 0.0
    %293 = vmatprep.subr.mxu0 0.0
    %294 = vmatpush1.msra.mxu0 0.0
    %295 = vmatprep.subr.mxu0 0.0
    %296 = vmatpush1.msra.mxu0 0.0
    %297 = vmatprep.subr.mxu0 0.0
    %298 = vmatpush1.msra.mxu0 0.0
    %299 = vmatprep.subr.mxu0 0.0
    %300 = vmatpush1.msra.mxu0 0.0
    %301 = vmatprep.subr.mxu0 0.0
    %302 = vmatpush1.msra.mxu0 0.0
    %303 = vmatprep.subr.mxu0 0.0
    %304 = vmatpush1.msra.mxu0 0.0
    %305 = vmatprep.subr.mxu0 0.0
    %306 = vmatpush1.msra.mxu0 0.0
    %307 = vmatprep.subr.mxu0 0.0
    %308 = vmatpush1.msra.mxu0 0.0
    %309 = vmatprep.subr.mxu0 0.0
    %310 = vmatpush1.msra.mxu0 0.0
    %311 = vmatprep.mubr.f32.mxu0 0.0
    %312 = vmatmul.mubr.f32.gmra.mrb[0].mxu0 %v175
    %v313 = vpop.f32.mrb[0].mxu0
    %v314 = vadd.f32 0.0, %v313
    %v315 = vpop.f32.mrb[0].mxu0
    %316 = vdwg.mxu0
    %v317 = vmul.f32 %v244, 0.0009765625
    %v318 = vmul.f32 %v314, 0.0009765625
    %v319 = vmul.f32 %v317, %v317
    %v320 = vsub.f32 %v318, %v319
    %v321 = vmax.f32 %v320, 0.0
    %v322 = vadd.f32 %v321, 1e-05
    %v323 = vrsqrt.pop %v322
    %v324 = vmul.f32 %v156, %v323
    %v325 = vmul.f32 %v317, %v324
    %v326 = vsub.f32 %v157, %v325
    %vm327 = vcmask 23552
    %v329 = vsel %vm327, %v46, 0
    %v332 = vsel %vm327, %v47, 0
    %v335 = vsel %vm327, %v48, 0
    %vm337 = vcmask 1042432
    %v339 = vsel %vm337, %v324, 0
    %341 = vmatprep.subr.mxu0 0.0
    %342 = vmatpush1.msra.mxu0 %v339
    %343 = vmatprep.subr.mxu0 0.0
    %344 = vmatpush1.msra.mxu0 0.0
    %345 = vmatprep.subr.mxu0 0.0
    %346 = vmatpush1.msra.mxu0 0.0
    %347 = vmatprep.subr.mxu0 0.0
    %348 = vmatpush1.msra.mxu0 0.0
    %349 = vmatprep.subr.mxu0 0.0
    %350 = vmatpush1.msra.mxu0 0.0
    %351 = vmatprep.subr.mxu0 0.0
    %352 = vmatpush1.msra.mxu0 0.0
    %353 = vmatprep.subr.mxu0 0.0
    %354 = vmatpush1.msra.mxu0 0.0
    %355 = vmatprep.subr.mxu0 0.0
    %356 = vmatpush1.msra.mxu0 0.0
    %357 = vmatprep.subr.mxu0 0.0
    %358 = vmatpush1.msra.mxu0 0.0
    %359 = vmatprep.subr.mxu0 0.0
    %360 = vmatpush1.msra.mxu0 0.0
    %361 = vmatprep.subr.mxu0 0.0
    %362 = vmatpush1.msra.mxu0 0.0
    %363 = vmatprep.subr.mxu0 0.0
    %364 = vmatpush1.msra.mxu0 0.0
    %365 = vmatprep.subr.mxu0 0.0
    %366 = vmatpush1.msra.mxu0 0.0
    %367 = vmatprep.subr.mxu0 0.0
    %368 = vmatpush1.msra.mxu0 0.0
    %369 = vmatprep.subr.mxu0 0.0
    %370 = vmatpush1.msra.mxu0 0.0
    %371 = vmatprep.subr.mxu0 0.0
    %372 = vmatpush1.msra.mxu0 0.0
    %373 = vmatprep.subr.mxu0 0.0
    %374 = vmatpush1.msra.mxu0 0.0
    %375 = vmatprep.subr.mxu0 0.0
    %376 = vmatpush1.msra.mxu0 0.0
    %377 = vmatprep.subr.mxu0 0.0
    %378 = vmatpush1.msra.mxu0 0.0
    %379 = vmatprep.subr.mxu0 0.0
    %380 = vmatpush1.msra.mxu0 0.0
    %381 = vmatprep.subr.mxu0 0.0
    %382 = vmatpush1.msra.mxu0 0.0
    %383 = vmatprep.subr.mxu0 0.0
    %384 = vmatpush1.msra.mxu0 0.0
    %385 = vmatprep.subr.mxu0 0.0
    %386 = vmatpush1.msra.mxu0 0.0
    %387 = vmatprep.subr.mxu0 0.0
    %388 = vmatpush1.msra.mxu0 0.0
    %389 = vmatprep.subr.mxu0 0.0
    %390 = vmatpush1.msra.mxu0 0.0
    %391 = vmatprep.subr.mxu0 0.0
    %392 = vmatpush1.msra.mxu0 0.0
    %393 = vmatprep.subr.mxu0 0.0
    %394 = vmatpush1.msra.mxu0 0.0
    %395 = vmatprep.subr.mxu0 0.0
    %396 = vmatpush1.msra.mxu0 0.0
    %397 = vmatprep.subr.mxu0 0.0
    %398 = vmatpush1.msra.mxu0 0.0
    %399 = vmatprep.subr.mxu0 0.0
    %400 = vmatpush1.msra.mxu0 0.0
    %401 = vmatprep.subr.mxu0 0.0
    %402 = vmatpush1.msra.mxu0 0.0
    %403 = vmatprep.subr.mxu0 0.0
    %404 = vmatpush1.msra.mxu0 0.0
    %405 = vmatprep.mubr.f32.mxu0 0.0
    %406 = vmatmul.mubr.f32.gmra.mrb[0].mxu0 %v329
    %v407 = vpop.f32.mrb[0].mxu0
    %v408 = vadd.f32 0.0, %v407
    %v409 = vpop.f32.mrb[0].mxu0
    %410 = vmatprep.mubr.f32.mxu0 0.0
    %411 = vmatmul.mubr.f32.gmra.mrb[0].mxu0 %v332
    %v412 = vpop.f32.mrb[0].mxu0
    %v413 = vadd.f32 0.0, %v412
    %v414 = vpop.f32.mrb[0].mxu0
    %415 = vmatprep.mubr.f32.mxu0 0.0
    %416 = vmatmul.mubr.f32.gmra.mrb[0].mxu0 %v335
    %v417 = vpop.f32.mrb[0].mxu0
    %v418 = vadd.f32 0.0, %v417
    %v419 = vpop.f32.mrb[0].mxu0
    %420 = vdwg.mxu0
    %v422 = vsel %vm337, %v326, 0
    %424 = vmatprep.subr.mxu0 0.0
    %425 = vmatpush1.msra.mxu0 %v422
    %426 = vmatprep.subr.mxu0 0.0
    %427 = vmatpush1.msra.mxu0 0.0
    %428 = vmatprep.subr.mxu0 0.0
    %429 = vmatpush1.msra.mxu0 0.0
    %430 = vmatprep.subr.mxu0 0.0
    %431 = vmatpush1.msra.mxu0 0.0
    %432 = vmatprep.subr.mxu0 0.0
    %433 = vmatpush1.msra.mxu0 0.0
    %434 = vmatprep.subr.mxu0 0.0
    %435 = vmatpush1.msra.mxu0 0.0
    %436 = vmatprep.subr.mxu0 0.0
    %437 = vmatpush1.msra.mxu0 0.0
    %438 = vmatprep.subr.mxu0 0.0
    %439 = vmatpush1.msra.mxu0 0.0
    %440 = vmatprep.subr.mxu0 0.0
    %441 = vmatpush1.msra.mxu0 0.0
    %442 = vmatprep.subr.mxu0 0.0
    %443 = vmatpush1.msra.mxu0 0.0
    %444 = vmatprep.subr.mxu0 0.0
    %445 = vmatpush1.msra.mxu0 0.0
    %446 = vmatprep.subr.mxu0 0.0
    %447 = vmatpush1.msra.mxu0 0.0
    %448 = vmatprep.subr.mxu0 0.0
    %449 = vmatpush1.msra.mxu0 0.0
    %450 = vmatprep.subr.mxu0 0.0
    %451 = vmatpush1.msra.mxu0 0.0
    %452 = vmatprep.subr.mxu0 0.0
    %453 = vmatpush1.msra.mxu0 0.0
    %454 = vmatprep.subr.mxu0 0.0
    %455 = vmatpush1.msra.mxu0 0.0
    %456 = vmatprep.subr.mxu0 0.0
    %457 = vmatpush1.msra.mxu0 0.0
    %458 = vmatprep.subr.mxu0 0.0
    %459 = vmatpush1.msra.mxu0 0.0
    %460 = vmatprep.subr.mxu0 0.0
    %461 = vmatpush1.msra.mxu0 0.0
    %462 = vmatprep.subr.mxu0 0.0
    %463 = vmatpush1.msra.mxu0 0.0
    %464 = vmatprep.subr.mxu0 0.0
    %465 = vmatpush1.msra.mxu0 0.0
    %466 = vmatprep.subr.mxu0 0.0
    %467 = vmatpush1.msra.mxu0 0.0
    %468 = vmatprep.subr.mxu0 0.0
    %469 = vmatpush1.msra.mxu0 0.0
    %470 = vmatprep.subr.mxu0 0.0
    %471 = vmatpush1.msra.mxu0 0.0
    %472 = vmatprep.subr.mxu0 0.0
    %473 = vmatpush1.msra.mxu0 0.0
    %474 = vmatprep.subr.mxu0 0.0
    %475 = vmatpush1.msra.mxu0 0.0
    %476 = vmatprep.subr.mxu0 0.0
    %477 = vmatpush1.msra.mxu0 0.0
    %478 = vmatprep.subr.mxu0 0.0
    %479 = vmatpush1.msra.mxu0 0.0
    %480 = vmatprep.subr.mxu0 0.0
    %481 = vmatpush1.msra.mxu0 0.0
    %482 = vmatprep.subr.mxu0 0.0
    %483 = vmatpush1.msra.mxu0 0.0
    %484 = vmatprep.subr.mxu0 0.0
    %485 = vmatpush1.msra.mxu0 0.0
    %486 = vmatprep.subr.mxu0 0.0
    %487 = vmatpush1.msra.mxu0 0.0
    %488 = vmatprep.mubr.f32.mxu0 0.0
    %489 = vmatmul.mubr.f32.gmra.mrb[0].mxu0 %v329
    %v490 = vpop.f32.mrb[0].mxu0
    %v491 = vadd.f32 0.0, %v490
    %v492 = vpop.f32.mrb[0].mxu0
    %493 = vmatprep.mubr.f32.mxu0 0.0
    %494 = vmatmul.mubr.f32.gmra.mrb[0].mxu0 %v332
    %v495 = vpop.f32.mrb[0].mxu0
    %v496 = vadd.f32 0.0, %v495
    %v497 = vpop.f32.mrb[0].mxu0
    %498 = vmatprep.mubr.f32.mxu0 0.0
    %499 = vmatmul.mubr.f32.gmra.mrb[0].mxu0 %v335
    %v500 = vpop.f32.mrb[0].mxu0
    %v501 = vadd.f32 0.0, %v500
    %v502 = vpop.f32.mrb[0].mxu0
    %503 = vdwg.mxu0
    %505 = vset.pattern.permute.xlu0 0
    %506 = vperm.xlu0 %505, %v408
    %v507 = vpop.permute.xlu0 %506
    %510 = vset.pattern.permute.xlu0 0
    %511 = vperm.xlu0 %510, %v413
    %v512 = vpop.permute.xlu0 %511
    %515 = vset.pattern.permute.xlu0 0
    %516 = vperm.xlu0 %515, %v418
    %v517 = vpop.permute.xlu0 %516
    %v519 = vmul.f32 %v153, %v507
    %v520 = vmul.f32 %v154, %v512
    %v521 = vmul.f32 %v155, %v517
    %523 = vset.pattern.permute.xlu0 0
    %524 = vperm.xlu0 %523, %v491
    %v525 = vpop.permute.xlu0 %524
    %528 = vset.pattern.permute.xlu0 0
    %529 = vperm.xlu0 %528, %v496
    %v530 = vpop.permute.xlu0 %529
    %533 = vset.pattern.permute.xlu0 0
    %534 = vperm.xlu0 %533, %v501
    %v535 = vpop.permute.xlu0 %534
    %v537 = vadd.f32 %v519, %v525
    %v538 = vadd.f32 %v520, %v530
    %v539 = vadd.f32 %v521, %v535
    %v540 = vld [vmem:[%s7] sm:$0xff]
    %v541 = vld [vmem:[%s7 + $0x8] sm:$0xff]
    %v542 = vld [vmem:[%s7 + $0x10] sm:$0xff]
    %v543 = vld [vmem:[%s7 + $0x18] sm:$0xff]
    %v544 = vld [vmem:[%s7 + $0x20] sm:$0xff]
    %v545 = vld [vmem:[%s7 + $0x28] sm:$0xff]
    %v546 = vld [vmem:[%s7 + $0x30] sm:$0xff]
    %v547 = vld [vmem:[%s7 + $0x38] sm:$0xff]
    %v548 = vld [vmem:[%s7 + $0x40] sm:$0xff]
    %v549 = vld [vmem:[%s7 + $0x48] sm:$0xff]
    %v550 = vld [vmem:[%s7 + $0x50] sm:$0xff]
    %v551 = vld [vmem:[%s7 + $0x58] sm:$0xff]
    %v552 = vld [vmem:[%s7 + $0x60] sm:$0xff]
    %v553 = vld [vmem:[%s7 + $0x68] sm:$0xff]
    %v554 = vld [vmem:[%s7 + $0x70] sm:$0xff]
    %v555 = vld [vmem:[%s7 + $0x78] sm:$0xff]
    %v556 = vld [vmem:[%s8] sm:$0x1]
    %v558 = vlaneseq
    %v559 = vshrl.u32 %v558, 7
    %v560 = vsub.s32 0, %v559
    %v561 = vrot.slane %v556, %v560
    %563 = vmatprep.subr.mxu0 0.0
    %564 = vmatpush1.msra.mxu0 %v540
    %565 = vmatprep.subr.mxu0 0.0
    %566 = vmatpush1.msra.mxu0 %v541
    %567 = vmatprep.subr.mxu0 0.0
    %568 = vmatpush1.msra.mxu0 %v542
    %569 = vmatprep.subr.mxu0 0.0
    %570 = vmatpush1.msra.mxu0 %v543
    %571 = vmatprep.subr.mxu0 0.0
    %572 = vmatpush1.msra.mxu0 %v544
    %573 = vmatprep.subr.mxu0 0.0
    %574 = vmatpush1.msra.mxu0 %v545
    %575 = vmatprep.subr.mxu0 0.0
    %576 = vmatpush1.msra.mxu0 %v546
    %577 = vmatprep.subr.mxu0 0.0
    %578 = vmatpush1.msra.mxu0 %v547
    %579 = vmatprep.subr.mxu0 0.0
    %580 = vmatpush1.msra.mxu0 %v548
    %581 = vmatprep.subr.mxu0 0.0
    %582 = vmatpush1.msra.mxu0 %v549
    %583 = vmatprep.subr.mxu0 0.0
    %584 = vmatpush1.msra.mxu0 %v550
    %585 = vmatprep.subr.mxu0 0.0
    %586 = vmatpush1.msra.mxu0 %v551
    %587 = vmatprep.subr.mxu0 0.0
    %588 = vmatpush1.msra.mxu0 %v552
    %589 = vmatprep.subr.mxu0 0.0
    %590 = vmatpush1.msra.mxu0 %v553
    %591 = vmatprep.subr.mxu0 0.0
    %592 = vmatpush1.msra.mxu0 %v554
    %593 = vmatprep.subr.mxu0 0.0
    %594 = vmatpush1.msra.mxu0 %v555
    %595 = vmatprep.subr.mxu0 0.0
    %596 = vmatpush1.msra.mxu0 0.0
    %597 = vmatprep.subr.mxu0 0.0
    %598 = vmatpush1.msra.mxu0 0.0
    %599 = vmatprep.subr.mxu0 0.0
    %600 = vmatpush1.msra.mxu0 0.0
    %601 = vmatprep.subr.mxu0 0.0
    %602 = vmatpush1.msra.mxu0 0.0
    %603 = vmatprep.subr.mxu0 0.0
    %604 = vmatpush1.msra.mxu0 0.0
    %605 = vmatprep.subr.mxu0 0.0
    %606 = vmatpush1.msra.mxu0 0.0
    %607 = vmatprep.subr.mxu0 0.0
    %608 = vmatpush1.msra.mxu0 0.0
    %609 = vmatprep.subr.mxu0 0.0
    %610 = vmatpush1.msra.mxu0 0.0
    %611 = vmatprep.subr.mxu0 0.0
    %612 = vmatpush1.msra.mxu0 0.0
    %613 = vmatprep.subr.mxu0 0.0
    %614 = vmatpush1.msra.mxu0 0.0
    %615 = vmatprep.subr.mxu0 0.0
    %616 = vmatpush1.msra.mxu0 0.0
    %617 = vmatprep.subr.mxu0 0.0
    %618 = vmatpush1.msra.mxu0 0.0
    %619 = vmatprep.subr.mxu0 0.0
    %620 = vmatpush1.msra.mxu0 0.0
    %621 = vmatprep.subr.mxu0 0.0
    %622 = vmatpush1.msra.mxu0 0.0
    %623 = vmatprep.subr.mxu0 0.0
    %624 = vmatpush1.msra.mxu0 0.0
    %625 = vmatprep.subr.mxu0 0.0
    %626 = vmatpush1.msra.mxu0 0.0
    %627 = vmatprep.mubr.f32.mxu0 0.0
    %628 = vmatmul.mubr.f32.gmra.mrb[0].mxu0 %v537
    %v629 = vpop.f32.mrb[0].mxu0
    %v630 = vadd.f32 %v561, %v629
    %v631 = vpop.f32.mrb[0].mxu0
    %632 = vmatprep.mubr.f32.mxu0 0.0
    %633 = vmatmul.mubr.f32.gmra.mrb[0].mxu0 %v538
    %v634 = vpop.f32.mrb[0].mxu0
    %v635 = vadd.f32 %v561, %v634
    %v636 = vpop.f32.mrb[0].mxu0
    %637 = vmatprep.mubr.f32.mxu0 0.0
    %638 = vmatmul.mubr.f32.gmra.mrb[0].mxu0 %v539
    %v639 = vpop.f32.mrb[0].mxu0
    %v640 = vadd.f32 %v561, %v639
    %v641 = vpop.f32.mrb[0].mxu0
    %642 = vdwg.mxu0
    %v643 = vmax.f32 %v630, 0.0
    %v644 = vmax.f32 %v635, 0.0
    %v645 = vmax.f32 %v640, 0.0
    %v646 = vld [vmem:[%s9] sm:$0x7]
    %v647 = vld [vmem:[%s10] sm:$0x7]
    %vm648 = vcmask 523264
    %v649 = vsel %vm648, %v643, 0.0
    %650 = vadd.xlane.f32.xlu0 %v649
    %v651 = vpop.xlane.xlu0 %650
    %v652 = vsel %vm648, %v644, 0.0
    %653 = vadd.xlane.f32.xlu0 %v652
    %v654 = vpop.xlane.xlu0 %653
    %v655 = vsel %vm648, %v645, 0.0
    %656 = vadd.xlane.f32.xlu0 %v655
    %v657 = vpop.xlane.xlu0 %656
    %v658 = vmul.f32 %v643, %v643
    %v659 = vmul.f32 %v644, %v644
    %v660 = vmul.f32 %v645, %v645
    %v661 = vsel %vm648, %v658, 0.0
    %662 = vadd.xlane.f32.xlu0 %v661
    %v663 = vpop.xlane.xlu0 %662
    %v664 = vsel %vm648, %v659, 0.0
    %665 = vadd.xlane.f32.xlu0 %v664
    %v666 = vpop.xlane.xlu0 %665
    %v667 = vsel %vm648, %v660, 0.0
    %668 = vadd.xlane.f32.xlu0 %v667
    %v669 = vpop.xlane.xlu0 %668
    %670 = vmatprep.subr.mxu0 0.0
    %671 = vmatpush1.msra.mxu0 %v651
    %672 = vmatprep.subr.mxu0 0.0
    %673 = vmatpush1.msra.mxu0 %v654
    %674 = vmatprep.subr.mxu0 0.0
    %675 = vmatpush1.msra.mxu0 %v657
    %676 = vmatprep.subr.mxu0 0.0
    %677 = vmatpush1.msra.mxu0 0.0
    %678 = vmatprep.subr.mxu0 0.0
    %679 = vmatpush1.msra.mxu0 0.0
    %680 = vmatprep.subr.mxu0 0.0
    %681 = vmatpush1.msra.mxu0 0.0
    %682 = vmatprep.subr.mxu0 0.0
    %683 = vmatpush1.msra.mxu0 0.0
    %684 = vmatprep.subr.mxu0 0.0
    %685 = vmatpush1.msra.mxu0 0.0
    %686 = vmatprep.subr.mxu0 0.0
    %687 = vmatpush1.msra.mxu0 0.0
    %688 = vmatprep.subr.mxu0 0.0
    %689 = vmatpush1.msra.mxu0 0.0
    %690 = vmatprep.subr.mxu0 0.0
    %691 = vmatpush1.msra.mxu0 0.0
    %692 = vmatprep.subr.mxu0 0.0
    %693 = vmatpush1.msra.mxu0 0.0
    %694 = vmatprep.subr.mxu0 0.0
    %695 = vmatpush1.msra.mxu0 0.0
    %696 = vmatprep.subr.mxu0 0.0
    %697 = vmatpush1.msra.mxu0 0.0
    %698 = vmatprep.subr.mxu0 0.0
    %699 = vmatpush1.msra.mxu0 0.0
    %700 = vmatprep.subr.mxu0 0.0
    %701 = vmatpush1.msra.mxu0 0.0
    %702 = vmatprep.subr.mxu0 0.0
    %703 = vmatpush1.msra.mxu0 0.0
    %704 = vmatprep.subr.mxu0 0.0
    %705 = vmatpush1.msra.mxu0 0.0
    %706 = vmatprep.subr.mxu0 0.0
    %707 = vmatpush1.msra.mxu0 0.0
    %708 = vmatprep.subr.mxu0 0.0
    %709 = vmatpush1.msra.mxu0 0.0
    %710 = vmatprep.subr.mxu0 0.0
    %711 = vmatpush1.msra.mxu0 0.0
    %712 = vmatprep.subr.mxu0 0.0
    %713 = vmatpush1.msra.mxu0 0.0
    %714 = vmatprep.subr.mxu0 0.0
    %715 = vmatpush1.msra.mxu0 0.0
    %716 = vmatprep.subr.mxu0 0.0
    %717 = vmatpush1.msra.mxu0 0.0
    %718 = vmatprep.subr.mxu0 0.0
    %719 = vmatpush1.msra.mxu0 0.0
    %720 = vmatprep.subr.mxu0 0.0
    %721 = vmatpush1.msra.mxu0 0.0
    %722 = vmatprep.subr.mxu0 0.0
    %723 = vmatpush1.msra.mxu0 0.0
    %724 = vmatprep.subr.mxu0 0.0
    %725 = vmatpush1.msra.mxu0 0.0
    %726 = vmatprep.subr.mxu0 0.0
    %727 = vmatpush1.msra.mxu0 0.0
    %728 = vmatprep.subr.mxu0 0.0
    %729 = vmatpush1.msra.mxu0 0.0
    %730 = vmatprep.subr.mxu0 0.0
    %731 = vmatpush1.msra.mxu0 0.0
    %732 = vmatprep.subr.mxu0 0.0
    %733 = vmatpush1.msra.mxu0 0.0
    %734 = vmatprep.mubr.f32.mxu0 0.0
    %735 = vmatmul.mubr.f32.gmra.mrb[0].mxu0 %v175
    %v736 = vpop.f32.mrb[0].mxu0
    %v737 = vadd.f32 0.0, %v736
    %v738 = vpop.f32.mrb[0].mxu0
    %739 = vdwg.mxu0
    %740 = vmatprep.subr.mxu0 0.0
    %741 = vmatpush1.msra.mxu0 %v663
    %742 = vmatprep.subr.mxu0 0.0
    %743 = vmatpush1.msra.mxu0 %v666
    %744 = vmatprep.subr.mxu0 0.0
    %745 = vmatpush1.msra.mxu0 %v669
    %746 = vmatprep.subr.mxu0 0.0
    %747 = vmatpush1.msra.mxu0 0.0
    %748 = vmatprep.subr.mxu0 0.0
    %749 = vmatpush1.msra.mxu0 0.0
    %750 = vmatprep.subr.mxu0 0.0
    %751 = vmatpush1.msra.mxu0 0.0
    %752 = vmatprep.subr.mxu0 0.0
    %753 = vmatpush1.msra.mxu0 0.0
    %754 = vmatprep.subr.mxu0 0.0
    %755 = vmatpush1.msra.mxu0 0.0
    %756 = vmatprep.subr.mxu0 0.0
    %757 = vmatpush1.msra.mxu0 0.0
    %758 = vmatprep.subr.mxu0 0.0
    %759 = vmatpush1.msra.mxu0 0.0
    %760 = vmatprep.subr.mxu0 0.0
    %761 = vmatpush1.msra.mxu0 0.0
    %762 = vmatprep.subr.mxu0 0.0
    %763 = vmatpush1.msra.mxu0 0.0
    %764 = vmatprep.subr.mxu0 0.0
    %765 = vmatpush1.msra.mxu0 0.0
    %766 = vmatprep.subr.mxu0 0.0
    %767 = vmatpush1.msra.mxu0 0.0
    %768 = vmatprep.subr.mxu0 0.0
    %769 = vmatpush1.msra.mxu0 0.0
    %770 = vmatprep.subr.mxu0 0.0
    %771 = vmatpush1.msra.mxu0 0.0
    %772 = vmatprep.subr.mxu0 0.0
    %773 = vmatpush1.msra.mxu0 0.0
    %774 = vmatprep.subr.mxu0 0.0
    %775 = vmatpush1.msra.mxu0 0.0
    %776 = vmatprep.subr.mxu0 0.0
    %777 = vmatpush1.msra.mxu0 0.0
    %778 = vmatprep.subr.mxu0 0.0
    %779 = vmatpush1.msra.mxu0 0.0
    %780 = vmatprep.subr.mxu0 0.0
    %781 = vmatpush1.msra.mxu0 0.0
    %782 = vmatprep.subr.mxu0 0.0
    %783 = vmatpush1.msra.mxu0 0.0
    %784 = vmatprep.subr.mxu0 0.0
    %785 = vmatpush1.msra.mxu0 0.0
    %786 = vmatprep.subr.mxu0 0.0
    %787 = vmatpush1.msra.mxu0 0.0
    %788 = vmatprep.subr.mxu0 0.0
    %789 = vmatpush1.msra.mxu0 0.0
    %790 = vmatprep.subr.mxu0 0.0
    %791 = vmatpush1.msra.mxu0 0.0
    %792 = vmatprep.subr.mxu0 0.0
    %793 = vmatpush1.msra.mxu0 0.0
    %794 = vmatprep.subr.mxu0 0.0
    %795 = vmatpush1.msra.mxu0 0.0
    %796 = vmatprep.subr.mxu0 0.0
    %797 = vmatpush1.msra.mxu0 0.0
    %798 = vmatprep.subr.mxu0 0.0
    %799 = vmatpush1.msra.mxu0 0.0
    %800 = vmatprep.subr.mxu0 0.0
    %801 = vmatpush1.msra.mxu0 0.0
    %802 = vmatprep.subr.mxu0 0.0
    %803 = vmatpush1.msra.mxu0 0.0
    %804 = vmatprep.mubr.f32.mxu0 0.0
    %805 = vmatmul.mubr.f32.gmra.mrb[0].mxu0 %v175
    %v806 = vpop.f32.mrb[0].mxu0
    %v807 = vadd.f32 0.0, %v806
    %v808 = vpop.f32.mrb[0].mxu0
    %809 = vdwg.mxu0
    %v810 = vmul.f32 %v737, 0.001953125
    %v811 = vmul.f32 %v807, 0.001953125
    %v812 = vmul.f32 %v810, %v810
    %v813 = vsub.f32 %v811, %v812
    %v814 = vmax.f32 %v813, 0.0
    %v815 = vadd.f32 %v814, 1e-05
    %v816 = vrsqrt.pop %v815
    %v817 = vmul.f32 %v646, %v816
    %v818 = vmul.f32 %v810, %v817
    %v819 = vsub.f32 %v647, %v818
    %v821 = vsel %vm337, %v817, 0
    %823 = vmatprep.subr.mxu0 0.0
    %824 = vmatpush1.msra.mxu0 %v821
    %825 = vmatprep.subr.mxu0 0.0
    %826 = vmatpush1.msra.mxu0 0.0
    %827 = vmatprep.subr.mxu0 0.0
    %828 = vmatpush1.msra.mxu0 0.0
    %829 = vmatprep.subr.mxu0 0.0
    %830 = vmatpush1.msra.mxu0 0.0
    %831 = vmatprep.subr.mxu0 0.0
    %832 = vmatpush1.msra.mxu0 0.0
    %833 = vmatprep.subr.mxu0 0.0
    %834 = vmatpush1.msra.mxu0 0.0
    %835 = vmatprep.subr.mxu0 0.0
    %836 = vmatpush1.msra.mxu0 0.0
    %837 = vmatprep.subr.mxu0 0.0
    %838 = vmatpush1.msra.mxu0 0.0
    %839 = vmatprep.subr.mxu0 0.0
    %840 = vmatpush1.msra.mxu0 0.0
    %841 = vmatprep.subr.mxu0 0.0
    %842 = vmatpush1.msra.mxu0 0.0
    %843 = vmatprep.subr.mxu0 0.0
    %844 = vmatpush1.msra.mxu0 0.0
    %845 = vmatprep.subr.mxu0 0.0
    %846 = vmatpush1.msra.mxu0 0.0
    %847 = vmatprep.subr.mxu0 0.0
    %848 = vmatpush1.msra.mxu0 0.0
    %849 = vmatprep.subr.mxu0 0.0
    %850 = vmatpush1.msra.mxu0 0.0
    %851 = vmatprep.subr.mxu0 0.0
    %852 = vmatpush1.msra.mxu0 0.0
    %853 = vmatprep.subr.mxu0 0.0
    %854 = vmatpush1.msra.mxu0 0.0
    %855 = vmatprep.subr.mxu0 0.0
    %856 = vmatpush1.msra.mxu0 0.0
    %857 = vmatprep.subr.mxu0 0.0
    %858 = vmatpush1.msra.mxu0 0.0
    %859 = vmatprep.subr.mxu0 0.0
    %860 = vmatpush1.msra.mxu0 0.0
    %861 = vmatprep.subr.mxu0 0.0
    %862 = vmatpush1.msra.mxu0 0.0
    %863 = vmatprep.subr.mxu0 0.0
    %864 = vmatpush1.msra.mxu0 0.0
    %865 = vmatprep.subr.mxu0 0.0
    %866 = vmatpush1.msra.mxu0 0.0
    %867 = vmatprep.subr.mxu0 0.0
    %868 = vmatpush1.msra.mxu0 0.0
    %869 = vmatprep.subr.mxu0 0.0
    %870 = vmatpush1.msra.mxu0 0.0
    %871 = vmatprep.subr.mxu0 0.0
    %872 = vmatpush1.msra.mxu0 0.0
    %873 = vmatprep.subr.mxu0 0.0
    %874 = vmatpush1.msra.mxu0 0.0
    %875 = vmatprep.subr.mxu0 0.0
    %876 = vmatpush1.msra.mxu0 0.0
    %877 = vmatprep.subr.mxu0 0.0
    %878 = vmatpush1.msra.mxu0 0.0
    %879 = vmatprep.subr.mxu0 0.0
    %880 = vmatpush1.msra.mxu0 0.0
    %881 = vmatprep.subr.mxu0 0.0
    %882 = vmatpush1.msra.mxu0 0.0
    %883 = vmatprep.subr.mxu0 0.0
    %884 = vmatpush1.msra.mxu0 0.0
    %885 = vmatprep.subr.mxu0 0.0
    %886 = vmatpush1.msra.mxu0 0.0
    %887 = vmatprep.mubr.f32.mxu0 0.0
    %888 = vmatmul.mubr.f32.gmra.mrb[0].mxu0 %v329
    %v889 = vpop.f32.mrb[0].mxu0
    %v890 = vadd.f32 0.0, %v889
    %v891 = vpop.f32.mrb[0].mxu0
    %892 = vmatprep.mubr.f32.mxu0 0.0
    %893 = vmatmul.mubr.f32.gmra.mrb[0].mxu0 %v332
    %v894 = vpop.f32.mrb[0].mxu0
    %v895 = vadd.f32 0.0, %v894
    %v896 = vpop.f32.mrb[0].mxu0
    %897 = vmatprep.mubr.f32.mxu0 0.0
    %898 = vmatmul.mubr.f32.gmra.mrb[0].mxu0 %v335
    %v899 = vpop.f32.mrb[0].mxu0
    %v900 = vadd.f32 0.0, %v899
    %v901 = vpop.f32.mrb[0].mxu0
    %902 = vdwg.mxu0
    %v904 = vsel %vm337, %v819, 0
    %906 = vmatprep.subr.mxu0 0.0
    %907 = vmatpush1.msra.mxu0 %v904
    %908 = vmatprep.subr.mxu0 0.0
    %909 = vmatpush1.msra.mxu0 0.0
    %910 = vmatprep.subr.mxu0 0.0
    %911 = vmatpush1.msra.mxu0 0.0
    %912 = vmatprep.subr.mxu0 0.0
    %913 = vmatpush1.msra.mxu0 0.0
    %914 = vmatprep.subr.mxu0 0.0
    %915 = vmatpush1.msra.mxu0 0.0
    %916 = vmatprep.subr.mxu0 0.0
    %917 = vmatpush1.msra.mxu0 0.0
    %918 = vmatprep.subr.mxu0 0.0
    %919 = vmatpush1.msra.mxu0 0.0
    %920 = vmatprep.subr.mxu0 0.0
    %921 = vmatpush1.msra.mxu0 0.0
    %922 = vmatprep.subr.mxu0 0.0
    %923 = vmatpush1.msra.mxu0 0.0
    %924 = vmatprep.subr.mxu0 0.0
    %925 = vmatpush1.msra.mxu0 0.0
    %926 = vmatprep.subr.mxu0 0.0
    %927 = vmatpush1.msra.mxu0 0.0
    %928 = vmatprep.subr.mxu0 0.0
    %929 = vmatpush1.msra.mxu0 0.0
    %930 = vmatprep.subr.mxu0 0.0
    %931 = vmatpush1.msra.mxu0 0.0
    %932 = vmatprep.subr.mxu0 0.0
    %933 = vmatpush1.msra.mxu0 0.0
    %934 = vmatprep.subr.mxu0 0.0
    %935 = vmatpush1.msra.mxu0 0.0
    %936 = vmatprep.subr.mxu0 0.0
    %937 = vmatpush1.msra.mxu0 0.0
    %938 = vmatprep.subr.mxu0 0.0
    %939 = vmatpush1.msra.mxu0 0.0
    %940 = vmatprep.subr.mxu0 0.0
    %941 = vmatpush1.msra.mxu0 0.0
    %942 = vmatprep.subr.mxu0 0.0
    %943 = vmatpush1.msra.mxu0 0.0
    %944 = vmatprep.subr.mxu0 0.0
    %945 = vmatpush1.msra.mxu0 0.0
    %946 = vmatprep.subr.mxu0 0.0
    %947 = vmatpush1.msra.mxu0 0.0
    %948 = vmatprep.subr.mxu0 0.0
    %949 = vmatpush1.msra.mxu0 0.0
    %950 = vmatprep.subr.mxu0 0.0
    %951 = vmatpush1.msra.mxu0 0.0
    %952 = vmatprep.subr.mxu0 0.0
    %953 = vmatpush1.msra.mxu0 0.0
    %954 = vmatprep.subr.mxu0 0.0
    %955 = vmatpush1.msra.mxu0 0.0
    %956 = vmatprep.subr.mxu0 0.0
    %957 = vmatpush1.msra.mxu0 0.0
    %958 = vmatprep.subr.mxu0 0.0
    %959 = vmatpush1.msra.mxu0 0.0
    %960 = vmatprep.subr.mxu0 0.0
    %961 = vmatpush1.msra.mxu0 0.0
    %962 = vmatprep.subr.mxu0 0.0
    %963 = vmatpush1.msra.mxu0 0.0
    %964 = vmatprep.subr.mxu0 0.0
    %965 = vmatpush1.msra.mxu0 0.0
    %966 = vmatprep.subr.mxu0 0.0
    %967 = vmatpush1.msra.mxu0 0.0
    %968 = vmatprep.subr.mxu0 0.0
    %969 = vmatpush1.msra.mxu0 0.0
    %970 = vmatprep.mubr.f32.mxu0 0.0
    %971 = vmatmul.mubr.f32.gmra.mrb[0].mxu0 %v329
    %v972 = vpop.f32.mrb[0].mxu0
    %v973 = vadd.f32 0.0, %v972
    %v974 = vpop.f32.mrb[0].mxu0
    %975 = vmatprep.mubr.f32.mxu0 0.0
    %976 = vmatmul.mubr.f32.gmra.mrb[0].mxu0 %v332
    %v977 = vpop.f32.mrb[0].mxu0
    %v978 = vadd.f32 0.0, %v977
    %v979 = vpop.f32.mrb[0].mxu0
    %980 = vmatprep.mubr.f32.mxu0 0.0
    %981 = vmatmul.mubr.f32.gmra.mrb[0].mxu0 %v335
    %v982 = vpop.f32.mrb[0].mxu0
    %v983 = vadd.f32 0.0, %v982
    %v984 = vpop.f32.mrb[0].mxu0
    %985 = vdwg.mxu0
    %987 = vset.pattern.permute.xlu0 0
    %988 = vperm.xlu0 %987, %v890
    %v989 = vpop.permute.xlu0 %988
    %992 = vset.pattern.permute.xlu0 0
    %993 = vperm.xlu0 %992, %v895
    %v994 = vpop.permute.xlu0 %993
    %997 = vset.pattern.permute.xlu0 0
    %998 = vperm.xlu0 %997, %v900
    %v999 = vpop.permute.xlu0 %998
    %v1001 = vmul.f32 %v643, %v989
    %v1002 = vmul.f32 %v644, %v994
    %v1003 = vmul.f32 %v645, %v999
    %1005 = vset.pattern.permute.xlu0 0
    %1006 = vperm.xlu0 %1005, %v973
    %v1007 = vpop.permute.xlu0 %1006
    %1010 = vset.pattern.permute.xlu0 0
    %1011 = vperm.xlu0 %1010, %v978
    %v1012 = vpop.permute.xlu0 %1011
    %1015 = vset.pattern.permute.xlu0 0
    %1016 = vperm.xlu0 %1015, %v983
    %v1017 = vpop.permute.xlu0 %1016
    %v1019 = vadd.f32 %v1001, %v1007
    %v1020 = vadd.f32 %v1002, %v1012
    %v1021 = vadd.f32 %v1003, %v1017
    %v1022 = vld [vmem:[%s11] sm:$0xff]
    %v1023 = vld [vmem:[%s11 + $0x8] sm:$0xff]
    %v1024 = vld [vmem:[%s11 + $0x10] sm:$0xff]
    %v1025 = vld [vmem:[%s11 + $0x18] sm:$0xff]
    %v1026 = vld [vmem:[%s11 + $0x20] sm:$0xff]
    %v1027 = vld [vmem:[%s11 + $0x28] sm:$0xff]
    %v1028 = vld [vmem:[%s11 + $0x30] sm:$0xff]
    %v1029 = vld [vmem:[%s11 + $0x38] sm:$0xff]
    %v1030 = vld [vmem:[%s12] sm:$0x1]
    %v1032 = vlaneseq
    %v1033 = vshrl.u32 %v1032, 7
    %v1034 = vsub.s32 0, %v1033
    %v1035 = vrot.slane %v1030, %v1034
    %v1038 = vsel %vm648, %v1019, 0
    %v1041 = vsel %vm648, %v1020, 0
    %v1044 = vsel %vm648, %v1021, 0
    %1046 = vmatprep.subr.mxu0 0.0
    %1047 = vmatpush1.msra.mxu0 %v1022
    %1048 = vmatprep.subr.mxu0 0.0
    %1049 = vmatpush1.msra.mxu0 %v1023
    %1050 = vmatprep.subr.mxu0 0.0
    %1051 = vmatpush1.msra.mxu0 %v1024
    %1052 = vmatprep.subr.mxu0 0.0
    %1053 = vmatpush1.msra.mxu0 %v1025
    %1054 = vmatprep.subr.mxu0 0.0
    %1055 = vmatpush1.msra.mxu0 %v1026
    %1056 = vmatprep.subr.mxu0 0.0
    %1057 = vmatpush1.msra.mxu0 %v1027
    %1058 = vmatprep.subr.mxu0 0.0
    %1059 = vmatpush1.msra.mxu0 %v1028
    %1060 = vmatprep.subr.mxu0 0.0
    %1061 = vmatpush1.msra.mxu0 %v1029
    %1062 = vmatprep.subr.mxu0 0.0
    %1063 = vmatpush1.msra.mxu0 0.0
    %1064 = vmatprep.subr.mxu0 0.0
    %1065 = vmatpush1.msra.mxu0 0.0
    %1066 = vmatprep.subr.mxu0 0.0
    %1067 = vmatpush1.msra.mxu0 0.0
    %1068 = vmatprep.subr.mxu0 0.0
    %1069 = vmatpush1.msra.mxu0 0.0
    %1070 = vmatprep.subr.mxu0 0.0
    %1071 = vmatpush1.msra.mxu0 0.0
    %1072 = vmatprep.subr.mxu0 0.0
    %1073 = vmatpush1.msra.mxu0 0.0
    %1074 = vmatprep.subr.mxu0 0.0
    %1075 = vmatpush1.msra.mxu0 0.0
    %1076 = vmatprep.subr.mxu0 0.0
    %1077 = vmatpush1.msra.mxu0 0.0
    %1078 = vmatprep.subr.mxu0 0.0
    %1079 = vmatpush1.msra.mxu0 0.0
    %1080 = vmatprep.subr.mxu0 0.0
    %1081 = vmatpush1.msra.mxu0 0.0
    %1082 = vmatprep.subr.mxu0 0.0
    %1083 = vmatpush1.msra.mxu0 0.0
    %1084 = vmatprep.subr.mxu0 0.0
    %1085 = vmatpush1.msra.mxu0 0.0
    %1086 = vmatprep.subr.mxu0 0.0
    %1087 = vmatpush1.msra.mxu0 0.0
    %1088 = vmatprep.subr.mxu0 0.0
    %1089 = vmatpush1.msra.mxu0 0.0
    %1090 = vmatprep.subr.mxu0 0.0
    %1091 = vmatpush1.msra.mxu0 0.0
    %1092 = vmatprep.subr.mxu0 0.0
    %1093 = vmatpush1.msra.mxu0 0.0
    %1094 = vmatprep.subr.mxu0 0.0
    %1095 = vmatpush1.msra.mxu0 0.0
    %1096 = vmatprep.subr.mxu0 0.0
    %1097 = vmatpush1.msra.mxu0 0.0
    %1098 = vmatprep.subr.mxu0 0.0
    %1099 = vmatpush1.msra.mxu0 0.0
    %1100 = vmatprep.subr.mxu0 0.0
    %1101 = vmatpush1.msra.mxu0 0.0
    %1102 = vmatprep.subr.mxu0 0.0
    %1103 = vmatpush1.msra.mxu0 0.0
    %1104 = vmatprep.subr.mxu0 0.0
    %1105 = vmatpush1.msra.mxu0 0.0
    %1106 = vmatprep.subr.mxu0 0.0
    %1107 = vmatpush1.msra.mxu0 0.0
    %1108 = vmatprep.subr.mxu0 0.0
    %1109 = vmatpush1.msra.mxu0 0.0
    %1110 = vmatprep.mubr.f32.mxu0 0.0
    %1111 = vmatmul.mubr.f32.gmra.mrb[0].mxu0 %v1038
    %v1112 = vpop.f32.mrb[0].mxu0
    %v1113 = vadd.f32 %v1035, %v1112
    %v1114 = vpop.f32.mrb[0].mxu0
    %1115 = vmatprep.mubr.f32.mxu0 0.0
    %1116 = vmatmul.mubr.f32.gmra.mrb[0].mxu0 %v1041
    %v1117 = vpop.f32.mrb[0].mxu0
    %v1118 = vadd.f32 %v1035, %v1117
    %v1119 = vpop.f32.mrb[0].mxu0
    %1120 = vmatprep.mubr.f32.mxu0 0.0
    %1121 = vmatmul.mubr.f32.gmra.mrb[0].mxu0 %v1044
    %v1122 = vpop.f32.mrb[0].mxu0
    %v1123 = vadd.f32 %v1035, %v1122
    %v1124 = vpop.f32.mrb[0].mxu0
    %1125 = vdwg.mxu0
    %v1126 = vmax.f32 %v1113, %v1118
    %v1127 = vmax.f32 %v1126, %v1123
    %v1128 = vsub.f32 %v1113, %v1127
    %v1129 = vmul.f32 %v1128, 1.442695
    %v1130 = vpow.pop %v1129
    %v1131 = vsub.f32 %v1118, %v1127
    %v1132 = vmul.f32 %v1131, 1.442695
    %v1133 = vpow.pop %v1132
    %v1134 = vsub.f32 %v1123, %v1127
    %v1135 = vmul.f32 %v1134, 1.442695
    %v1136 = vpow.pop %v1135
    %v1137 = vadd.f32 %v1130, %v1133
    %v1138 = vadd.f32 %v1137, %v1136
    %v1139 = vrcp.pop %v1138
    %v1140 = vmul.f32 1.0, %v1139
    %v1141 = vmul.f32 %v1130, %v1140
    %1142 = vst [vmem:[#allocation2] sm:$0xff] %v1141
    %v1143 = vmul.f32 %v1133, %v1140
    %1144 = vst [vmem:[#allocation2 + $0x8] sm:$0xff] %v1143
    %v1145 = vmul.f32 %v1136, %v1140
    %1146 = vst [vmem:[#allocation2 + $0x10] sm:$0xff] %v1145
    // Predicated region
    $region54: #{tpu_custom_call.1} parent=1 // pred_check
      _
    $region55: #{tpu_custom_call.1} parent=1 // pred_check_branch
      %1148 = sbr.rel (0) target = $region57
    $region56: #{tpu_custom_call.1} parent=1 // pred_region
      %s1150 = ssub.s32 384, 384
      %1151 = vsyncadd [#allocation3], %s1150
      %s1153 = sshll.u32 [#allocation2], 4
      %s1154 = int_to_ptr.vmem [resolvable:$true] %s1153
      %1156 = dma.vmem_to_hbm [thread:$0]  %s1154, 384, %s13, [#allocation3]
    $region57: #{tpu_custom_call.1} parent=1 // pred_fallthru
      _
    // Predicated region
    $region58: #{tpu_custom_call.1} parent=1 // pred_check
      _
    $region59: #{tpu_custom_call.1} parent=1 // pred_check_branch
      %1158 = sbr.rel (0) target = $region61
    $region60: #{tpu_custom_call.1} parent=1 // pred_region
      %1159 = dma.done [#allocation3], 384
    $region61: #{tpu_custom_call.1} parent=1 // pred_fallthru
      _
    %1160 = vsyncpa [#allocation3], 1

</llo_original>
